<compile_context>
chip_gen: v6e
topology: v6e:2x2x1
jax: 0.10.0
libtpu: 0.0.40
codegen_flags: <defaults>
</compile_context>

<pallas_src>
import functools

import jax
import jax.numpy as jnp
from jax.experimental import pallas as pl
from jax.experimental.pallas import tpu as pltpu


def _cdiv(a, b):
    return -(-a // b)


def _round_up(a, b):
    return _cdiv(a, b) * b


# minimum sublane tile per dtype itemsize (f32 -> 8, bf16 -> 16, int8 -> 32)
_MIN_SUBLANES = {4: 8, 2: 16, 1: 32}


def _dice_stats_kernel(x_ref, y_ref, tp_ref, ss_ref, sy_ref,
                       tp_acc, ss_acc, sy_acc,
                       *, S, TS, n_s_total, n_s_per_p, n_p):
    """Accumulate per-row tp / sum(sigmoid(x)) / sum(y) over spatial tiles.

    x_ref, y_ref          : (TR, TS)  logits / targets for the current tile
    tp/ss/sy_ref          : (TR, 1)   per-(p, row-block) outputs (epilogue only)
    tp/ss/sy_acc          : (TR, 128) lane-wide f32 accumulators (VMEM scratch)
    """
    p = pl.program_id(0)       # spatial-half split ("parallel", v7x megacore)
    s_idx = pl.program_id(2)   # spatial reduction axis (innermost, "arbitrary")
    g_tile = p * n_s_per_p + s_idx   # global spatial tile index

    @pl.when(s_idx == 0)
    def _init():
        tp_acc[...] = jnp.zeros_like(tp_acc)
        ss_acc[...] = jnp.zeros_like(ss_acc)
        sy_acc[...] = jnp.zeros_like(sy_acc)

    n_groups = TS // 128

    def _accumulate(masked):
        xv = x_ref[...].astype(jnp.float32)
        yv = y_ref[...].astype(jnp.float32)
        # robust_sigmoid's clamp(., 0, 1) is a mathematical no-op for sigmoid.
        sv = jax.nn.sigmoid(xv)
        if masked:
            # Ragged last tile: columns >= S hold unspecified VMEM bytes.
            # Keep the select (NOT a multiply) so NaN/Inf garbage is blocked.
            col = jax.lax.broadcasted_iota(jnp.int32, xv.shape, 1) + g_tile * TS
            valid = col < S
            sv = jnp.where(valid, sv, 0.0)
            yv = jnp.where(valid, yv, 0.0)
        prod = sv * yv
        # Lane-wide partial sums: plain VPU adds on full vregs.  Static,
        # lane-aligned 128-wide slices are views (no relayout); the XLU
        # cross-lane reduce happens only once per row block (epilogue).
        tp_v = tp_acc[...]
        ss_v = ss_acc[...]
        sy_v = sy_acc[...]
        for g in range(n_groups):
            lo = g * 128
            tp_v = tp_v + prod[:, lo:lo + 128]
            ss_v = ss_v + sv[:, lo:lo + 128]
            sy_v = sy_v + yv[:, lo:lo + 128]
        tp_acc[...] = tp_v
        ss_acc[...] = ss_v
        sy_acc[...] = sy_v

    ragged = (S % TS) != 0                      # static: last tile is partial
    overhang = (n_p * n_s_per_p) > n_s_total    # static: odd tile count split 2 ways

    if ragged:
        # Unmasked fast path for steady-state tiles; mask only the globally
        # last tile.  Duplicate overhang steps (g_tile >= n_s_total) fall
        # through both branches and contribute nothing.
        @pl.when(g_tile < n_s_total - 1)
        def _fast():
            _accumulate(False)

        @pl.when(g_tile == n_s_total - 1)
        def _last():
            _accumulate(True)
    elif overhang:
        @pl.when(g_tile < n_s_total)
        def _fast():
            _accumulate(False)
    else:
        _accumulate(False)

    @pl.when(s_idx == n_s_per_p - 1)
    def _store():
        tp_ref[...] = jnp.sum(tp_acc[...], axis=1, keepdims=True)
        ss_ref[...] = jnp.sum(ss_acc[...], axis=1, keepdims=True)
        sy_ref[...] = jnp.sum(sy_acc[...], axis=1, keepdims=True)


@functools.partial(jax.jit, static_argnames=("smooth",))
def soft_dice_with_logits_loss(x, y, smooth=1.0):
    """Pallas implementation of SoftDiceWithLogitsLoss.forward(x, y).

    x : (B, C, H, W) float logits
    y : (B, C, H, W) targets with the same shape as x (the `y_onehot = gt` branch)
    returns scalar float32 loss = 1 - mean_{b,c} dice(b, c)
    """
    # TODO(synk): loss_mask and the label-map -> scatter_ one-hot branch of
    # get_tp_fp_fn_tn are not implemented; only the y-same-shape-as-x path is.
    B, C, H, W = x.shape
    R = B * C
    S = H * W

    x2 = x.reshape(R, S)   # contiguous view, no dtype cast (cast is in-kernel)
    y2 = y.reshape(R, S)

    # --- row tile (dtype-aware min sublane tile) -----------------------------
    TR = max(_MIN_SUBLANES.get(jnp.dtype(x2.dtype).itemsize, 8),
             _MIN_SUBLANES.get(jnp.dtype(y2.dtype).itemsize, 8))
    R_pad = _round_up(R, TR)
    if R_pad != R:
        # zero-padded rows are sliced back off before the mean
        x2 = jnp.pad(x2, ((0, R_pad - R), (0, 0)))
        y2 = jnp.pad(y2, ((0, R_pad - R), (0, 0)))
    n_r = R_pad // TR

    # --- spatial tile ---------------------------------------------------------
    # Budget covers double-buffered inputs plus ~3 full-tile f32 temporaries;
    # ~6 MiB per step is already on the flat part of the tiling curve and fits
    # comfortably inside scoped VMEM on v5e/v6e/v7x.  Cap at 16K lanes.
    in_bytes = x2.dtype.itemsize + y2.dtype.itemsize
    per_col = TR * (2 * in_bytes + 3 * 4)
    budget = 6 * 1024 * 1024
    ts_budget = max(128, (budget // per_col) // 128 * 128)
    TS = min(_round_up(S, 128), ts_budget, 16 * 1024)

    n_s_total = _cdiv(S, TS)
    # v7x megacore: with a single row block, split the spatial reduction 2 ways
    # along an outer "parallel" axis; halves are summed in the wrapper epilogue.
    n_p = 2 if (n_r < 2 and n_s_total >= 2) else 1
    n_s_per_p = _cdiv(n_s_total, n_p)

    if n_p * n_s_per_p > n_s_total:
        # Clamp duplicate overhang steps onto the last valid tile (the kernel
        # skips their accumulation).
        def in_map(p, r, s):
            return (r, jnp.minimum(p * n_s_per_p + s, n_s_total - 1))
    else:
        def in_map(p, r, s):
            return (r, p * n_s_per_p + s)

    def out_map(p, r, s):
        return (p * n_r + r, 0)

    stat = jax.ShapeDtypeStruct((n_p * R_pad, 1), jnp.float32)
    kernel = functools.partial(
        _dice_stats_kernel, S=S, TS=TS,
        n_s_total=n_s_total, n_s_per_p=n_s_per_p, n_p=n_p)

    tp, ss, sy = pl.pallas_call(
        kernel,
        out_shape=(stat, stat, stat),
        grid_spec=pltpu.PrefetchScalarGridSpec(
            num_scalar_prefetch=0,
            grid=(n_p, n_r, n_s_per_p),
            in_specs=[
                pl.BlockSpec((TR, TS), in_map),
                pl.BlockSpec((TR, TS), in_map),
            ],
            out_specs=[
                pl.BlockSpec((TR, 1), out_map),
                pl.BlockSpec((TR, 1), out_map),
                pl.BlockSpec((TR, 1), out_map),
            ],
            scratch_shapes=[pltpu.VMEM((TR, 128), jnp.float32)] * 3,
        ),
        compiler_params=pltpu.CompilerParams(
            dimension_semantics=("parallel", "parallel", "arbitrary"),
            vmem_limit_bytes=32 * 1024 * 1024,
        ),
    )(x2, y2)

    def _collapse(stat_out):
        # (n_p * R_pad, 1) -> sum the spatial halves, drop padded rows.
        return jnp.sum(stat_out.reshape(n_p, R_pad), axis=0)[:R]

    tp = _collapse(tp)
    fp = _collapse(ss) - tp   # sum(s * (1 - y)) == sum(s) - tp   (exact identity)
    fn = _collapse(sy) - tp   # sum((1 - s) * y) == sum(y) - tp   (exact identity)

    nominator = 2.0 * tp + smooth
    denominator = 2.0 * tp + fp + fn + smooth
    dc = nominator / (denominator + 1e-8)
    return 1.0 - jnp.mean(dc)


def _reference_loss(x, y, smooth=1.0):
    """Pure-JAX reference mirroring the PyTorch forward (for sanity check)."""
    s = jnp.clip(jax.nn.sigmoid(x.astype(jnp.float32)), 0.0, 1.0)
    yv = y.astype(jnp.float32)
    axes = (2, 3)
    tp = jnp.sum(s * yv, axis=axes)
    fp = jnp.sum(s * (1.0 - yv), axis=axes)
    fn = jnp.sum((1.0 - s) * yv, axis=axes)
    dc = (2.0 * tp + smooth) / (2.0 * tp + fp + fn + smooth + 1e-8)
    return 1.0 - jnp.mean(dc)


if __name__ == "__main__":
    key = jax.random.PRNGKey(0)
    kx, ky = jax.random.split(key)

    B, C, H, W = 2, 4, 16, 16
    x = jax.random.normal(kx, (B, C, H, W), dtype=jnp.float32)
    # one-hot target along the channel dim (same shape as x -> `y_onehot = gt`)
    labels = jax.random.randint(ky, (B, H, W), 0, C)
    y = jax.nn.one_hot(labels, C, axis=1, dtype=jnp.float32)

    loss = soft_dice_with_logits_loss(x, y, smooth=1.0)
    loss = jax.block_until_ready(loss)

    ref = _reference_loss(x, y, smooth=1.0)
    assert jnp.allclose(loss, ref, atol=1e-5, rtol=1e-5), (loss, ref)

    print("KERNEL_OK")
</pallas_src>

<mosaic_0001>
module attributes {stable_mosaic.version = 11 : i64} {
  func.func @_dice_stats_kernel(%arg0: i32, %arg1: i32, %arg2: i32, %arg3: memref<8x256xf32, #tpu.memory_space<vmem>>, %arg4: memref<8x256xf32, #tpu.memory_space<vmem>>, %arg5: memref<8x1xf32, #tpu.memory_space<vmem>>, %arg6: memref<8x1xf32, #tpu.memory_space<vmem>>, %arg7: memref<8x1xf32, #tpu.memory_space<vmem>>, %arg8: memref<8x128xf32, #tpu.memory_space<vmem>>, %arg9: memref<8x128xf32, #tpu.memory_space<vmem>>, %arg10: memref<8x128xf32, #tpu.memory_space<vmem>>) attributes {dimension_semantics = [#tpu.dimension_semantics<parallel>, #tpu.dimension_semantics<parallel>, #tpu.dimension_semantics<arbitrary>], iteration_bounds = array<i64: 1, 1, 1>, scalar_prefetch = 0 : i64, scratch_operands = 3 : i64, tpu.core_type = #tpu.core_type<tc>, window_params = [{transform_indices = @transform_0, window_bounds = array<i64: 8, 256>}, {transform_indices = @transform_1, window_bounds = array<i64: 8, 256>}, {transform_indices = @transform_2, window_bounds = array<i64: 8, 1>}, {transform_indices = @transform_3, window_bounds = array<i64: 8, 1>}, {transform_indices = @transform_4, window_bounds = array<i64: 8, 1>}]} {
    %c0_i32 = arith.constant 0 : i32
    %0 = arith.cmpi eq, %arg2, %c0_i32 : i32
    %1 = arith.extui %0 : i1 to i32
    %c0_i32_0 = arith.constant 0 : i32
    %2 = arith.cmpi ne, %1, %c0_i32_0 : i32
    scf.if %2 {
      %cst_18 = arith.constant 0.000000e+00 : f32
      %32 = vector.broadcast %cst_18 : f32 to vector<8x128xf32>
      %c0_19 = arith.constant 0 : index
      %c0_20 = arith.constant 0 : index
      %33 = vector.load %arg8[%c0_19, %c0_20] : memref<8x128xf32, #tpu.memory_space<vmem>>, vector<8x128xf32>
      tpu.vector_store %arg8[%c0_19, %c0_20], %32 {strides = array<i32>} : memref<8x128xf32, #tpu.memory_space<vmem>>, vector<8x128xf32>,
      %cst_21 = arith.constant 0.000000e+00 : f32
      %34 = vector.broadcast %cst_21 : f32 to vector<8x128xf32>
      %c0_22 = arith.constant 0 : index
      %c0_23 = arith.constant 0 : index
      %35 = vector.load %arg9[%c0_22, %c0_23] : memref<8x128xf32, #tpu.memory_space<vmem>>, vector<8x128xf32>
      tpu.vector_store %arg9[%c0_22, %c0_23], %34 {strides = array<i32>} : memref<8x128xf32, #tpu.memory_space<vmem>>, vector<8x128xf32>,
      %cst_24 = arith.constant 0.000000e+00 : f32
      %36 = vector.broadcast %cst_24 : f32 to vector<8x128xf32>
      %c0_25 = arith.constant 0 : index
      %c0_26 = arith.constant 0 : index
      %37 = vector.load %arg10[%c0_25, %c0_26] : memref<8x128xf32, #tpu.memory_space<vmem>>, vector<8x128xf32>
      tpu.vector_store %arg10[%c0_25, %c0_26], %36 {strides = array<i32>} : memref<8x128xf32, #tpu.memory_space<vmem>>, vector<8x128xf32>,
    } else {
    }
    %c0 = arith.constant 0 : index
    %c0_1 = arith.constant 0 : index
    %3 = vector.load %arg3[%c0, %c0_1] : memref<8x256xf32, #tpu.memory_space<vmem>>, vector<8x256xf32>
    %c0_2 = arith.constant 0 : index
    %c0_3 = arith.constant 0 : index
    %4 = vector.load %arg4[%c0_2, %c0_3] : memref<8x256xf32, #tpu.memory_space<vmem>>, vector<8x256xf32>
    %5 = arith.negf %3 : vector<8x256xf32>
    %6 = math.exp %5 : vector<8x256xf32>
    %cst = arith.constant 1.000000e+00 : f32
    %7 = vector.broadcast %cst : f32 to vector<8x256xf32>
    %8 = arith.addf %7, %6 : vector<8x256xf32>
    %9 = arith.divf %7, %8 : vector<8x256xf32>
    %10 = arith.mulf %9, %4 : vector<8x256xf32>
    %c0_4 = arith.constant 0 : index
    %c0_5 = arith.constant 0 : index
    %11 = vector.load %arg8[%c0_4, %c0_5] : memref<8x128xf32, #tpu.memory_space<vmem>>, vector<8x128xf32>
    %c0_6 = arith.constant 0 : index
    %c0_7 = arith.constant 0 : index
    %12 = vector.load %arg9[%c0_6, %c0_7] : memref<8x128xf32, #tpu.memory_space<vmem>>, vector<8x128xf32>
    %c0_8 = arith.constant 0 : index
    %c0_9 = arith.constant 0 : index
    %13 = vector.load %arg10[%c0_8, %c0_9] : memref<8x128xf32, #tpu.memory_space<vmem>>, vector<8x128xf32>
    %14 = vector.extract_strided_slice %10 {offsets = [0, 0], sizes = [8, 128], strides = [1, 1]} : vector<8x256xf32> to vector<8x128xf32>
    %15 = arith.addf %11, %14 : vector<8x128xf32>
    %16 = vector.extract_strided_slice %9 {offsets = [0, 0], sizes = [8, 128], strides = [1, 1]} : vector<8x256xf32> to vector<8x128xf32>
    %17 = arith.addf %12, %16 : vector<8x128xf32>
    %18 = vector.extract_strided_slice %4 {offsets = [0, 0], sizes = [8, 128], strides = [1, 1]} : vector<8x256xf32> to vector<8x128xf32>
    %19 = arith.addf %13, %18 : vector<8x128xf32>
    %20 = vector.extract_strided_slice %10 {offsets = [0, 128], sizes = [8, 128], strides = [1, 1]} : vector<8x256xf32> to vector<8x128xf32>
    %21 = arith.addf %15, %20 : vector<8x128xf32>
    %22 = vector.extract_strided_slice %9 {offsets = [0, 128], sizes = [8, 128], strides = [1, 1]} : vector<8x256xf32> to vector<8x128xf32>
    %23 = arith.addf %17, %22 : vector<8x128xf32>
    %24 = vector.extract_strided_slice %4 {offsets = [0, 128], sizes = [8, 128], strides = [1, 1]} : vector<8x256xf32> to vector<8x128xf32>
    %25 = arith.addf %19, %24 : vector<8x128xf32>
    %c0_10 = arith.constant 0 : index
    %c0_11 = arith.constant 0 : index
    %26 = vector.load %arg8[%c0_10, %c0_11] : memref<8x128xf32, #tpu.memory_space<vmem>>, vector<8x128xf32>
    tpu.vector_store %arg8[%c0_10, %c0_11], %21 {strides = array<i32>} : memref<8x128xf32, #tpu.memory_space<vmem>>, vector<8x128xf32>,
    %c0_12 = arith.constant 0 : index
    %c0_13 = arith.constant 0 : index
    %27 = vector.load %arg9[%c0_12, %c0_13] : memref<8x128xf32, #tpu.memory_space<vmem>>, vector<8x128xf32>
    tpu.vector_store %arg9[%c0_12, %c0_13], %23 {strides = array<i32>} : memref<8x128xf32, #tpu.memory_space<vmem>>, vector<8x128xf32>,
    %c0_14 = arith.constant 0 : index
    %c0_15 = arith.constant 0 : index
    %28 = vector.load %arg10[%c0_14, %c0_15] : memref<8x128xf32, #tpu.memory_space<vmem>>, vector<8x128xf32>
    tpu.vector_store %arg10[%c0_14, %c0_15], %25 {strides = array<i32>} : memref<8x128xf32, #tpu.memory_space<vmem>>, vector<8x128xf32>,
    %c0_i32_16 = arith.constant 0 : i32
    %29 = arith.cmpi eq, %arg2, %c0_i32_16 : i32
    %30 = arith.extui %29 : i1 to i32
    %c0_i32_17 = arith.constant 0 : i32
    %31 = arith.cmpi ne, %30, %c0_i32_17 : i32
    scf.if %31 {
      %c0_18 = arith.constant 0 : index
      %c0_19 = arith.constant 0 : index
      %32 = vector.load %arg8[%c0_18, %c0_19] : memref<8x128xf32, #tpu.memory_space<vmem>>, vector<8x128xf32>
      %cst_20 = arith.constant dense<0.000000e+00> : vector<8xf32>
      %33 = vector.multi_reduction <add>, %32, %cst_20 [1] : vector<8x128xf32> to vector<8xf32>
      %34 = vector.shape_cast %33 : vector<8xf32> to vector<8x1xf32>
      %c0_21 = arith.constant 0 : index
      %c0_22 = arith.constant 0 : index
      %35 = vector.load %arg5[%c0_21, %c0_22] : memref<8x1xf32, #tpu.memory_space<vmem>>, vector<8x1xf32>
      tpu.vector_store %arg5[%c0_21, %c0_22], %34 {strides = array<i32>} : memref<8x1xf32, #tpu.memory_space<vmem>>, vector<8x1xf32>,
      %c0_23 = arith.constant 0 : index
      %c0_24 = arith.constant 0 : index
      %36 = vector.load %arg9[%c0_23, %c0_24] : memref<8x128xf32, #tpu.memory_space<vmem>>, vector<8x128xf32>
      %cst_25 = arith.constant dense<0.000000e+00> : vector<8xf32>
      %37 = vector.multi_reduction <add>, %36, %cst_25 [1] : vector<8x128xf32> to vector<8xf32>
      %38 = vector.shape_cast %37 : vector<8xf32> to vector<8x1xf32>
      %c0_26 = arith.constant 0 : index
      %c0_27 = arith.constant 0 : index
      %39 = vector.load %arg6[%c0_26, %c0_27] : memref<8x1xf32, #tpu.memory_space<vmem>>, vector<8x1xf32>
      tpu.vector_store %arg6[%c0_26, %c0_27], %38 {strides = array<i32>} : memref<8x1xf32, #tpu.memory_space<vmem>>, vector<8x1xf32>,
      %c0_28 = arith.constant 0 : index
      %c0_29 = arith.constant 0 : index
      %40 = vector.load %arg10[%c0_28, %c0_29] : memref<8x128xf32, #tpu.memory_space<vmem>>, vector<8x128xf32>
      %cst_30 = arith.constant dense<0.000000e+00> : vector<8xf32>
      %41 = vector.multi_reduction <add>, %40, %cst_30 [1] : vector<8x128xf32> to vector<8xf32>
      %42 = vector.shape_cast %41 : vector<8xf32> to vector<8x1xf32>
      %c0_31 = arith.constant 0 : index
      %c0_32 = arith.constant 0 : index
      %43 = vector.load %arg7[%c0_31, %c0_32] : memref<8x1xf32, #tpu.memory_space<vmem>>, vector<8x1xf32>
      tpu.vector_store %arg7[%c0_31, %c0_32], %42 {strides = array<i32>} : memref<8x1xf32, #tpu.memory_space<vmem>>, vector<8x1xf32>,
    } else {
    }
    return
  }
  func.func @transform_0(%arg0: i32, %arg1: i32, %arg2: i32) -> (i32, i32) {
    %c1_i32 = arith.constant 1 : i32
    %0 = arith.muli %arg0, %c1_i32 : i32
    %1 = arith.addi %0, %arg2 : i32
    %c0_i32 = arith.constant 0 : i32
    return %arg1, %1 : i32, i32
  }
  func.func @transform_1(%arg0: i32, %arg1: i32, %arg2: i32) -> (i32, i32) {
    %c1_i32 = arith.constant 1 : i32
    %0 = arith.muli %arg0, %c1_i32 : i32
    %1 = arith.addi %0, %arg2 : i32
    %c0_i32 = arith.constant 0 : i32
    return %arg1, %1 : i32, i32
  }
  func.func @transform_2(%arg0: i32, %arg1: i32, %arg2: i32) -> (i32, i32) {
    %c1_i32 = arith.constant 1 : i32
    %0 = arith.muli %arg0, %c1_i32 : i32
    %1 = arith.addi %0, %arg1 : i32
    %c0_i32 = arith.constant 0 : i32
    %c0_i32_0 = arith.constant 0 : i32
    return %1, %c0_i32 : i32, i32
  }
  func.func @transform_3(%arg0: i32, %arg1: i32, %arg2: i32) -> (i32, i32) {
    %c1_i32 = arith.constant 1 : i32
    %0 = arith.muli %arg0, %c1_i32 : i32
    %1 = arith.addi %0, %arg1 : i32
    %c0_i32 = arith.constant 0 : i32
    %c0_i32_0 = arith.constant 0 : i32
    return %1, %c0_i32 : i32, i32
  }
  func.func @transform_4(%arg0: i32, %arg1: i32, %arg2: i32) -> (i32, i32) {
    %c1_i32 = arith.constant 1 : i32
    %0 = arith.muli %arg0, %c1_i32 : i32
    %1 = arith.addi %0, %arg1 : i32
    %c0_i32 = arith.constant 0 : i32
    %c0_i32_0 = arith.constant 0 : i32
    return %1, %c0_i32 : i32, i32
  }
}

</mosaic_0001>

<llo_original>
// kernel: soft_dice_with_logits_loss.1
$region0: #{soft_dice_with_logits_loss.1}
  #allocation0 [shape = 'u32[]', space=smem, size = 0x4, offset = 0x4, fixed_abs, tag = 'smem constant byte address 0x4 - core index']
  #allocation1 [shape = 'u32[144,128]{1,0:T(1,128)}', space=vmem, size = 0x12000, scoped, tag = 'internal scratch']
  #allocation2 [shape = 'f32[8,128]{1,0:T(8,128)}', space=vmem, size = 0x1000, scoped, tag = 'scratch operand']
  #allocation3 [shape = 'f32[8,128]{1,0:T(8,128)}', space=vmem, size = 0x1000, scoped, tag = 'scratch operand']
  #allocation4 [shape = 'f32[8,128]{1,0:T(8,128)}', space=vmem, size = 0x1000, scoped, tag = 'scratch operand']
  %s0 = inlined_call_operand.vmem [shape: f32[8,256], index: 0, kind: input, shape index: {}]
  %s1 = inlined_call_operand.vmem [shape: f32[8,256], index: 1, kind: input, shape index: {}]
  %s2 = inlined_call_operand.vmem [shape: f32[8,1], index: 2, kind: output, shape index: {0}]
  %s3 = inlined_call_operand.vmem [shape: f32[8,1], index: 3, kind: output, shape index: {1}]
  %s4 = inlined_call_operand.vmem [shape: f32[8,1], index: 4, kind: output, shape index: {2}]
  %5 = xla_tuple %s2, %s3, %s4
  %s6 = sld [smem:[#allocation0]]
  $region42: #{soft_dice_with_logits_loss.1} parent=0
    _
  %s8 = ssub.s32 1, %s6
  %s9 = scalar_select 0, %s8, %s6
  // Predicated region
  $region2: #{soft_dice_with_logits_loss.1} parent=0 // pred_check
    _
  $region3: #{soft_dice_with_logits_loss.1} parent=0 // pred_check_branch
    %11 = sbr.rel (0) target = $region5
  $region4: #{soft_dice_with_logits_loss.1} parent=0 // pred_region
    %s12 = sadd.s32 0, 0
    %s13 = smul.u32 2, %s12
    %p14 = scmp.lt.s32.totalorder %s13, 1
    %s15 = scalar_select %p14, %s13, 1
    %s16 = smul.addr %s15, 8
    %s17 = scalar_lea.vmem %s0, %s16
    %s18 = sadd.s32 0, 0
    %s19 = smul.u32 2, %s18
  $region5: #{soft_dice_with_logits_loss.1} parent=0 // pred_fallthru
    _
  // Predicated region
  $region6: #{soft_dice_with_logits_loss.1} parent=0 // pred_check
    _
  $region7: #{soft_dice_with_logits_loss.1} parent=0 // pred_check_branch
    %21 = sbr.rel (0) target = $region9
  $region8: #{soft_dice_with_logits_loss.1} parent=0 // pred_region
    %s22 = sadd.s32 0, 0
    %s23 = smul.u32 2, %s22
    %p24 = scmp.lt.s32.totalorder %s23, 1
    %s25 = scalar_select %p24, %s23, 1
    %s26 = smul.addr %s25, 8
    %s27 = scalar_lea.vmem %s1, %s26
    %s28 = sadd.s32 0, 0
    %s29 = smul.u32 2, %s28
  $region9: #{soft_dice_with_logits_loss.1} parent=0 // pred_fallthru
    _
  %s30 = sadd.s32 0, 0
  %s31 = smul.u32 2, %s30
  %p32 = scmp.lt.s32.totalorder %s31, 1
  %s33 = scalar_select %p32, %s31, 1
  %s34 = smul.addr %s33, 8
  %s35 = scalar_lea.vmem %s0, %s34
  %s36 = sadd.s32 0, 0
  %s37 = smul.u32 2, %s36
  %p38 = scmp.lt.s32.totalorder %s37, 1
  %s39 = scalar_select %p38, %s37, 1
  %s40 = smul.addr %s39, 8
  %s41 = scalar_lea.vmem %s1, %s40
  %s42 = sadd.s32 0, 0
  %p43 = scmp.lt.s32.totalorder %s42, 0
  %s44 = scalar_select %p43, %s42, 0
  %s45 = smul.addr %s44, 8
  %s46 = scalar_lea.vmem %s2, %s45
  %s47 = sadd.s32 0, 0
  %p48 = scmp.lt.s32.totalorder %s47, 0
  %s49 = scalar_select %p48, %s47, 0
  %s50 = smul.addr %s49, 8
  %s51 = scalar_lea.vmem %s3, %s50
  %s52 = sadd.s32 0, 0
  %p53 = scmp.lt.s32.totalorder %s52, 0
  %s54 = scalar_select %p53, %s52, 0
  %s55 = smul.addr %s54, 8
  %s56 = scalar_lea.vmem %s4, %s55
  %s57 = sadd.s32 0, 0
  %s58 = smul.u32 2, %s57
  %p59 = scmp.lt.s32.totalorder %s58, 1
  %s60 = scalar_select %p59, %s58, 1
  %s61 = smul.addr %s60, 8
  %s62 = scalar_lea.vmem %s0, %s61
  %s63 = sadd.s32 0, 0
  %s64 = smul.u32 2, %s63
  %s65 = sadd.s32 0, 0
  %s66 = smul.u32 2, %s65
  %p67 = scmp.lt.s32.totalorder %s66, 1
  %s68 = scalar_select %p67, %s66, 1
  %s69 = smul.addr %s68, 8
  %s70 = scalar_lea.vmem %s1, %s69
  %s71 = sadd.s32 0, 0
  %s72 = smul.u32 2, %s71
  %s73 = sadd.s32 0, 0
  %p74 = scmp.lt.s32.totalorder %s73, 0
  %s75 = scalar_select %p74, %s73, 0
  %s76 = smul.addr %s75, 8
  %s77 = scalar_lea.vmem %s2, %s76
  %s78 = sadd.s32 0, 0
  %s79 = sadd.s32 0, 0
  %p80 = scmp.lt.s32.totalorder %s79, 0
  %s81 = scalar_select %p80, %s79, 0
  %s82 = smul.addr %s81, 8
  %s83 = scalar_lea.vmem %s3, %s82
  %s84 = sadd.s32 0, 0
  %s85 = sadd.s32 0, 0
  %p86 = scmp.lt.s32.totalorder %s85, 0
  %s87 = scalar_select %p86, %s85, 0
  %s88 = smul.addr %s87, 8
  %s89 = scalar_lea.vmem %s4, %s88
  %s90 = sadd.s32 0, 0
  %p91 = scmp.eq.s32.totalorder 0, 0
  // Predicated region
  $region10: #{soft_dice_with_logits_loss.1} parent=0 // pred_check
    %p92 = pneg %p91
  $region11: #{soft_dice_with_logits_loss.1} parent=0 // pred_check_branch
    %94 = sbr.rel (%p92) target = $region13
  $region12: #{soft_dice_with_logits_loss.1} parent=0 // pred_region
    %95 = vst [vmem:[#allocation2] sm:$0xff] 0.0
    %96 = vst [vmem:[#allocation3] sm:$0xff] 0.0
    %97 = vst [vmem:[#allocation4] sm:$0xff] 0.0
  $region13: #{soft_dice_with_logits_loss.1} parent=0 // pred_fallthru
    _
  %v98 = vld [vmem:[%s62] sm:$0xff]
  %v99 = vld [vmem:[%s62 + $0x8] sm:$0xff]
  %v100 = vld [vmem:[%s70] sm:$0xff]
  %v101 = vld [vmem:[%s70 + $0x8] sm:$0xff]
  %v102 = vxor.u32 %v98, 2147483648
  %v103 = vxor.u32 %v99, 2147483648
  %v104 = vmul.f32 %v102, 1.442695
  %v105 = vpow.pop %v104
  %v106 = vmul.f32 %v103, 1.442695
  %v107 = vpow.pop %v106
  %v108 = vadd.f32 %v105, 1.0
  %v109 = vadd.f32 %v107, 1.0
  %v110 = vrcp.pop %v108
  %v111 = vmul.f32 1.0, %v110
  %v112 = vrcp.pop %v109
  %v113 = vmul.f32 1.0, %v112
  %v114 = vmul.f32 %v111, %v100
  %v115 = vmul.f32 %v113, %v101
  %v116 = vld [vmem:[#allocation2] sm:$0xff]
  %v117 = vld [vmem:[#allocation3] sm:$0xff]
  %v118 = vld [vmem:[#allocation4] sm:$0xff]
  %v119 = vadd.f32 %v116, %v114
  %v120 = vadd.f32 %v117, %v111
  %v121 = vadd.f32 %v118, %v100
  %v122 = vadd.f32 %v119, %v115
  %v123 = vadd.f32 %v120, %v113
  %v124 = vadd.f32 %v121, %v101
  %125 = vst [vmem:[#allocation2] sm:$0xff] %v122
  %126 = vst [vmem:[#allocation3] sm:$0xff] %v123
  %127 = vst [vmem:[#allocation4] sm:$0xff] %v124
  // Predicated region
  $region14: #{soft_dice_with_logits_loss.1} parent=0 // pred_check
    %p128 = pneg %p91
  $region15: #{soft_dice_with_logits_loss.1} parent=0 // pred_check_branch
    %130 = sbr.rel (%p128) target = $region17
  $region16: #{soft_dice_with_logits_loss.1} parent=0 // pred_region
    %v131 = vld [vmem:[#allocation2] sm:$0xff]
    %132 = vadd.xlane.f32.xlu0 %v131
    %v133 = vpop.xlane.xlu0 %132
    %vm134 = vcmask 7168
    %135 = vst.msk [vmem:[%s77] sm:$0xff] %vm134, %v133
    %v136 = vld [vmem:[#allocation3] sm:$0xff]
    %137 = vadd.xlane.f32.xlu0 %v136
    %v138 = vpop.xlane.xlu0 %137
    %139 = vst.msk [vmem:[%s83] sm:$0xff] %vm134, %v138
    %v140 = vld [vmem:[#allocation4] sm:$0xff]
    %141 = vadd.xlane.f32.xlu0 %v140
    %v142 = vpop.xlane.xlu0 %141
    %143 = vst.msk [vmem:[%s89] sm:$0xff] %vm134, %v142
  $region17: #{soft_dice_with_logits_loss.1} parent=0 // pred_fallthru
    _
  %s144 = sadd.s32 0, 0
  %p145 = scmp.lt.s32.totalorder %s144, 0
  %s146 = scalar_select %p145, %s144, 0
  %s147 = smul.addr %s146, 8
  %s148 = scalar_lea.vmem %s2, %s147
  %s149 = sadd.s32 0, 0
  %p150 = scmp.lt.s32.totalorder %s149, 0
  %s151 = scalar_select %p150, %s149, 0
  %s152 = smul.addr %s151, 8
  %s153 = scalar_lea.vmem %s3, %s152
  %s154 = sadd.s32 0, 0
  %p155 = scmp.lt.s32.totalorder %s154, 0
  %s156 = scalar_select %p155, %s154, 0
  %s157 = smul.addr %s156, 8
  %s158 = scalar_lea.vmem %s4, %s157
  // Predicated region
  $region18: #{soft_dice_with_logits_loss.1} parent=0 // pred_check
    _
  $region19: #{soft_dice_with_logits_loss.1} parent=0 // pred_check_branch
    %160 = sbr.rel (0) target = $region21
  $region20: #{soft_dice_with_logits_loss.1} parent=0 // pred_region
    %s161 = sadd.s32 0, 0
  $region21: #{soft_dice_with_logits_loss.1} parent=0 // pred_fallthru
    _
  // Predicated region
  $region22: #{soft_dice_with_logits_loss.1} parent=0 // pred_check
    _
  $region23: #{soft_dice_with_logits_loss.1} parent=0 // pred_check_branch
    %163 = sbr.rel (0) target = $region25
  $region24: #{soft_dice_with_logits_loss.1} parent=0 // pred_region
    %s164 = sadd.s32 0, 0
  $region25: #{soft_dice_with_logits_loss.1} parent=0 // pred_fallthru
    _
  // Predicated region
  $region26: #{soft_dice_with_logits_loss.1} parent=0 // pred_check
    _
  $region27: #{soft_dice_with_logits_loss.1} parent=0 // pred_check_branch
    %166 = sbr.rel (0) target = $region29
  $region28: #{soft_dice_with_logits_loss.1} parent=0 // pred_region
    %s167 = sadd.s32 0, 0
  $region29: #{soft_dice_with_logits_loss.1} parent=0 // pred_fallthru
    _
  // Predicated region
  $region30: #{soft_dice_with_logits_loss.1} parent=0 // pred_check
    _
  $region31: #{soft_dice_with_logits_loss.1} parent=0 // pred_check_branch
    %169 = sbr.rel (0) target = $region33
  $region32: #{soft_dice_with_logits_loss.1} parent=0 // pred_region
    %s170 = sadd.s32 0, 0
    %p171 = scmp.lt.s32.totalorder %s170, 0
    %s172 = scalar_select %p171, %s170, 0
    %s173 = smul.addr %s172, 8
    %s174 = scalar_lea.vmem %s2, %s173
  $region33: #{soft_dice_with_logits_loss.1} parent=0 // pred_fallthru
    _
  // Predicated region
  $region34: #{soft_dice_with_logits_loss.1} parent=0 // pred_check
    _
  $region35: #{soft_dice_with_logits_loss.1} parent=0 // pred_check_branch
    %176 = sbr.rel (0) target = $region37
  $region36: #{soft_dice_with_logits_loss.1} parent=0 // pred_region
    %s177 = sadd.s32 0, 0
    %p178 = scmp.lt.s32.totalorder %s177, 0
    %s179 = scalar_select %p178, %s177, 0
    %s180 = smul.addr %s179, 8
    %s181 = scalar_lea.vmem %s3, %s180
  $region37: #{soft_dice_with_logits_loss.1} parent=0 // pred_fallthru
    _
  // Predicated region
  $region38: #{soft_dice_with_logits_loss.1} parent=0 // pred_check
    _
  $region39: #{soft_dice_with_logits_loss.1} parent=0 // pred_check_branch
    %183 = sbr.rel (0) target = $region41
  $region40: #{soft_dice_with_logits_loss.1} parent=0 // pred_region
    %s184 = sadd.s32 0, 0
    %p185 = scmp.lt.s32.totalorder %s184, 0
    %s186 = scalar_select %p185, %s184, 0
    %s187 = smul.addr %s186, 8
    %s188 = scalar_lea.vmem %s4, %s187
  $region41: #{soft_dice_with_logits_loss.1} parent=0 // pred_fallthru
    _

</llo_original>
